<compile_context>
chip_gen: v6e
topology: v6e:2x2x1
jax: 0.10.0
libtpu: 0.0.40
codegen_flags: <defaults>
</compile_context>

<pallas_src>
import functools
import math

import jax
import jax.numpy as jnp
from jax.experimental import pallas as pl
from jax.experimental.pallas import tpu as pltpu

_SUBLANE = 8
_LANE = 128


def _round_up(x, m):
    return (x + m - 1) // m * m


def _hw_params():
    """(target_block_bytes, vmem_limit_bytes, fused_bytes_limit), generation-aware."""
    try:
        cap = int(pltpu.get_tpu_info().vmem_capacity_bytes)
    except Exception:
        cap = 64 << 20                      # conservative (v7x-sized)
    if cap <= (64 << 20):                   # v7x: 64 MiB VMEM per TensorCore
        target, limit = 4 << 20, 48 << 20
    else:                                   # v5e / v6e: 128 MiB
        target, limit = 8 << 20, 100 << 20
    fused_limit = min(cap // 12, 8 << 20)   # whole-array-resident threshold
    return target, limit, fused_limit


def _choose_blocks(n_rows, n_cols, target_bytes):
    """Pick (row_block, col_block, col_tiled) for the streaming kernels."""
    row_bytes = n_cols * 4
    if _SUBLANE * row_bytes <= target_bytes:
        # Full-width rows fit in a block: tile over rows only (no column mask).
        cb = n_cols
        rb = max(_SUBLANE, (target_bytes // row_bytes) // _SUBLANE * _SUBLANE)
        rb = min(rb, _round_up(n_rows, _SUBLANE))
        # Ensure >= 2 row blocks so the parallel axis can use both TCs on v7x.
        if n_rows >= 2 * _SUBLANE and pl.cdiv(n_rows, rb) < 2:
            rb = _round_up(pl.cdiv(n_rows, 2), _SUBLANE)
        return rb, cb, False
    # Very wide rows: 8-row strips, tiled along columns with accumulation.
    cb = max(_LANE, (target_bytes // (_SUBLANE * 4)) // _LANE * _LANE)
    cb = min(cb, _round_up(n_cols, _LANE))
    return _SUBLANE, cb, True


# ----------------------------- in-kernel RNG ---------------------------------

def _std_cauchy(shape):
    """Standard Cauchy draw from the (already seeded) hardware PRNG."""
    bits = pltpu.prng_random_bits(shape)
    if bits.dtype != jnp.int32:
        bits = pltpu.bitcast(bits, jnp.int32)
    frac = (bits & 0x00FFFFFF).astype(jnp.float32)        # 24 random bits
    u = (frac + 0.5) * jnp.float32(1.0 / (1 << 24))        # uniform in (0, 1)
    theta = (u - 0.5) * jnp.float32(math.pi)                # (-pi/2, pi/2)
    # tan(theta) written as sin/cos so only sin/cos lowerings are required.
    return jnp.sin(theta) / jnp.cos(theta)


# -------------- fused single-pass kernel (whole array VMEM-resident) ---------

def _fused_kernel(seed_ref, y_ref, out_ref, *, factor, inv_n, inv_nm1, inv_rows):
    y = y_ref[...].astype(jnp.float32)
    mean = jnp.sum(y, axis=1, keepdims=True) * inv_n
    c = y - mean
    var = jnp.sum(c * c, axis=1, keepdims=True) * inv_nm1   # unbiased (ddof=1)
    std = jnp.sqrt(var) * factor                             # (N, 1)
    scale = jnp.sum(std, keepdims=True) * inv_rows           # (1, 1)
    pltpu.prng_seed(seed_ref[0])
    t = _std_cauchy(y.shape)
    out_ref[...] = (y + scale * t).astype(out_ref.dtype)


# ------------------- pass 1: per-row scaled std ------------------------------

def _row_std_kernel(y_ref, std_ref, *, factor, inv_n, inv_nm1):
    # Full row resident -> numerically safe centered two-sweep variance.
    y = y_ref[...].astype(jnp.float32)
    mean = jnp.sum(y, axis=1, keepdims=True) * inv_n
    c = y - mean
    var = jnp.sum(c * c, axis=1, keepdims=True) * inv_nm1
    std_ref[...] = jnp.sqrt(var) * factor


def _row_std_coltiled_kernel(y_ref, std_ref, s_ref, ss_ref, *,
                             n_cols, col_block, factor, inv_n, inv_nm1):
    j = pl.program_id(1)

    @pl.when(j == 0)
    def _():
        s_ref[...] = jnp.zeros_like(s_ref)
        ss_ref[...] = jnp.zeros_like(ss_ref)

    y = y_ref[...].astype(jnp.float32)
    col = j * col_block + jax.lax.broadcasted_iota(jnp.int32, y.shape, 1)
    y = jnp.where(col < n_cols, y, 0.0)                 # mask ragged column tail
    s_ref[...] += jnp.sum(y, axis=1, keepdims=True)
    ss_ref[...] += jnp.sum(y * y, axis=1, keepdims=True)

    @pl.when(j == pl.num_programs(1) - 1)
    def _():
        s = s_ref[...]
        # One-pass variance; TODO(synk): switch to a two-sweep centered column
        # pipeline if |mean| >> std inputs need better f32 accuracy here.
        var = jnp.maximum(ss_ref[...] - s * s * inv_n, 0.0) * inv_nm1
        std_ref[...] = jnp.sqrt(var) * factor


# ------------------- pass 2: out = y + scale * Cauchy ------------------------

def _add_noise_kernel(seed_ref, scale_ref, y_ref, out_ref):
    block = pl.program_id(0) * pl.num_programs(1) + pl.program_id(1)
    pltpu.prng_seed(seed_ref[0] + block)                 # distinct stream / block
    t = _std_cauchy(y_ref.shape)
    out_ref[...] = (y_ref[...].astype(jnp.float32) + scale_ref[0] * t
                    ).astype(out_ref.dtype)


def _add_noise_host_kernel(scale_ref, y_ref, t_ref, out_ref):
    # Fallback: noise drawn on the host and streamed through (extra HBM read).
    out_ref[...] = (y_ref[...].astype(jnp.float32) + scale_ref[0] * t_ref[...]
                    ).astype(out_ref.dtype)


# ------------------------------- wrappers -------------------------------------

def _row_scaled_std(y, factor, target_bytes, vmem_limit):
    """Pass 1: (N, 1) array of (unbiased row std) * factor."""
    N, L = y.shape
    rb, cb, col_tiled = _choose_blocks(N, L, target_bytes)
    inv_n = 1.0 / L
    inv_nm1 = 1.0 / (L - 1) if L > 1 else float("nan")   # NaN matches torch ddof=1
    if not col_tiled:
        return pl.pallas_call(
            functools.partial(_row_std_kernel, factor=factor,
                              inv_n=inv_n, inv_nm1=inv_nm1),
            out_shape=jax.ShapeDtypeStruct((N, 1), jnp.float32),
            grid=(pl.cdiv(N, rb),),
            in_specs=[pl.BlockSpec((rb, L), lambda i: (i, 0))],
            out_specs=pl.BlockSpec((rb, 1), lambda i: (i, 0)),
            compiler_params=pltpu.CompilerParams(
                dimension_semantics=("parallel",),
                vmem_limit_bytes=vmem_limit),
        )(y)
    return pl.pallas_call(
        functools.partial(_row_std_coltiled_kernel, n_cols=L, col_block=cb,
                          factor=factor, inv_n=inv_n, inv_nm1=inv_nm1),
        out_shape=jax.ShapeDtypeStruct((N, 1), jnp.float32),
        grid=(pl.cdiv(N, rb), pl.cdiv(L, cb)),
        in_specs=[pl.BlockSpec((rb, cb), lambda i, j: (i, j))],
        out_specs=pl.BlockSpec((rb, 1), lambda i, j: (i, 0)),
        scratch_shapes=[pltpu.VMEM((rb, 1), jnp.float32),
                        pltpu.VMEM((rb, 1), jnp.float32)],
        compiler_params=pltpu.CompilerParams(
            dimension_semantics=("parallel", "arbitrary"),
            vmem_limit_bytes=vmem_limit),
    )(y)


def _two_pass(y, seed, factor, target_bytes, vmem_limit, t=None):
    """Streaming path: pass 1 row stds -> scalar scale -> pass 2 add noise."""
    N, L = y.shape
    rb, cb, _ = _choose_blocks(N, L, target_bytes)
    row_std = _row_scaled_std(y, factor, target_bytes, vmem_limit)
    scale = jnp.mean(row_std).reshape(1).astype(jnp.float32)

    smem = pl.BlockSpec(memory_space=pltpu.MemorySpace.SMEM)
    tile = pl.BlockSpec((rb, cb), lambda i, j: (i, j))
    cparams = pltpu.CompilerParams(
        dimension_semantics=("parallel", "parallel"),
        vmem_limit_bytes=vmem_limit)
    grid = (pl.cdiv(N, rb), pl.cdiv(L, cb))

    if t is None:     # in-kernel Cauchy generation: no noise tensor in HBM
        return pl.pallas_call(
            _add_noise_kernel,
            out_shape=jax.ShapeDtypeStruct((N, L), y.dtype),
            grid=grid,
            in_specs=[smem, smem, tile],
            out_specs=tile,
            compiler_params=cparams,
        )(seed, scale, y)
    return pl.pallas_call(
        _add_noise_host_kernel,
        out_shape=jax.ShapeDtypeStruct((N, L), y.dtype),
        grid=grid,
        in_specs=[smem, tile, tile],
        out_specs=tile,
        compiler_params=cparams,
    )(scale, y, t)


def _fused(y, seed, factor, vmem_limit):
    N, L = y.shape
    inv_n = 1.0 / L
    inv_nm1 = 1.0 / (L - 1) if L > 1 else float("nan")
    return pl.pallas_call(
        functools.partial(_fused_kernel, factor=factor, inv_n=inv_n,
                          inv_nm1=inv_nm1, inv_rows=1.0 / N),
        out_shape=jax.ShapeDtypeStruct((N, L), y.dtype),
        in_specs=[pl.BlockSpec(memory_space=pltpu.MemorySpace.SMEM),
                  pl.BlockSpec(memory_space=pltpu.MemorySpace.VMEM)],
        out_specs=pl.BlockSpec(memory_space=pltpu.MemorySpace.VMEM),
        compiler_params=pltpu.CompilerParams(vmem_limit_bytes=vmem_limit),
    )(seed, y)


def student_t_noise(y, key, snr, *, force_two_pass=False):
    """y: [N, L]. Returns y + StudentT(df=1, scale=mean(row std * 10^(-snr/20)))."""
    N, L = y.shape
    factor = float(10.0 ** (-snr / 20.0))
    target_bytes, vmem_limit, fused_limit = _hw_params()
    seed = jax.random.randint(key, (1,), 0, jnp.iinfo(jnp.int32).max,
                              dtype=jnp.int32)
    use_fused = (not force_two_pass) and (N * L * 4 <= fused_limit)
    try:
        if use_fused:
            out = _fused(y, seed, factor, vmem_limit)
        else:
            out = _two_pass(y, seed, factor, target_bytes, vmem_limit)
        return jax.block_until_ready(out)
    except Exception:
        # Fallback for environments lacking pltpu.prng_* / sin / cos lowerings
        # (interpret mode, older toolchains): draw the Cauchy noise on the host
        # and stream it through the add kernel (costs one extra HBM read).
        t = jax.random.cauchy(key, (N, L), dtype=jnp.float32)
        out = _two_pass(y, seed, factor, target_bytes, vmem_limit, t=t)
        return jax.block_until_ready(out)


if __name__ == "__main__":
    root = jax.random.PRNGKey(0)
    k_y1, k_n1, k_y2, k_n2 = jax.random.split(root, 4)
    snr = 10.0
    factor = float(10.0 ** (-snr / 20.0))

    # --- small input: exercises the fused single-pass kernel -----------------
    N1, L1 = 8, 256
    y1 = jax.random.normal(k_y1, (N1, L1), dtype=jnp.float32) * 3.0 + 1.0
    out1 = jax.block_until_ready(student_t_noise(y1, k_n1, snr))
    assert out1.shape == y1.shape and out1.dtype == y1.dtype
    assert bool(jnp.all(jnp.isfinite(out1)))
    # |standard Cauchy| has median exactly 1; very loose band for n=2048.
    scale1 = jnp.mean(jnp.std(y1, axis=1, ddof=1)) * factor
    med1 = float(jnp.median(jnp.abs((out1 - y1) / scale1)))
    assert 0.4 < med1 < 2.5, f"fused path noise off: median={med1:.3f}"

    # --- larger / ragged input: forces the tiled two-pass path ---------------
    N2, L2 = 100, 300
    y2 = jax.random.normal(k_y2, (N2, L2), dtype=jnp.float32) * 2.0 - 0.5
    out2 = jax.block_until_ready(student_t_noise(y2, k_n2, snr,
                                                 force_two_pass=True))
    assert out2.shape == y2.shape and out2.dtype == y2.dtype

    # Deterministic check of the pass-1 kernel against a pure-JAX reference.
    tgt, lim, _ = _hw_params()
    std_k2 = _row_scaled_std(y2, factor, tgt, lim)[:, 0]
    std_ref2 = jnp.std(y2, axis=1, ddof=1) * factor
    assert jnp.allclose(std_k2, std_ref2, rtol=1e-4, atol=1e-6), (
        f"row std mismatch: {float(jnp.max(jnp.abs(std_k2 - std_ref2))):.3e}")

    scale2 = jnp.mean(std_ref2)
    med2 = float(jnp.median(jnp.abs((out2 - y2) / scale2)))
    assert 0.4 < med2 < 2.5, f"two-pass noise off: median={med2:.3f}"

    # Column-tiled pass-1 variant (very wide rows), forced via a tiny block
    # budget and checked deterministically against jnp.std.
    N3, L3 = 16, 1000
    y3 = jax.random.normal(jax.random.PRNGKey(7), (N3, L3), jnp.float32) * 1.5 + 4.0
    std_k3 = _row_scaled_std(y3, factor, 16 * 1024, 32 << 20)[:, 0]
    std_ref3 = jnp.std(y3, axis=1, ddof=1) * factor
    assert jnp.allclose(std_k3, std_ref3, rtol=2e-3, atol=1e-5), (
        f"col-tiled row std mismatch: "
        f"{float(jnp.max(jnp.abs(std_k3 - std_ref3))):.3e}")

    print("KERNEL_OK")
</pallas_src>

<mosaic_0001>
module attributes {stable_mosaic.version = 11 : i64} {
  func.func @_fused_kernel(%arg0: memref<1xi32, #tpu.memory_space<smem>>, %arg1: memref<8x256xf32, #tpu.memory_space<vmem>>, %arg2: memref<8x256xf32, #tpu.memory_space<vmem>>) attributes {dimension_semantics = [], scalar_prefetch = 0 : i64, scratch_operands = 0 : i64, tpu.core_type = #tpu.core_type<tc>} {
    %c0 = arith.constant 0 : index
    %c0_0 = arith.constant 0 : index
    %0 = vector.load %arg1[%c0, %c0_0] : memref<8x256xf32, #tpu.memory_space<vmem>>, vector<8x256xf32>
    %cst = arith.constant dense<0.000000e+00> : vector<8xf32>
    %1 = vector.multi_reduction <add>, %0, %cst [1] : vector<8x256xf32> to vector<8xf32>
    %2 = vector.shape_cast %1 : vector<8xf32> to vector<8x1xf32>
    %cst_1 = arith.constant 3.906250e-03 : f32
    %3 = vector.broadcast %cst_1 : f32 to vector<8x1xf32>
    %4 = arith.mulf %2, %3 : vector<8x1xf32>
    %5 = vector.broadcast %4 : vector<8x1xf32> to vector<8x256xf32>
    %6 = arith.subf %0, %5 : vector<8x256xf32>
    %7 = arith.mulf %6, %6 : vector<8x256xf32>
    %cst_2 = arith.constant dense<0.000000e+00> : vector<8xf32>
    %8 = vector.multi_reduction <add>, %7, %cst_2 [1] : vector<8x256xf32> to vector<8xf32>
    %9 = vector.shape_cast %8 : vector<8xf32> to vector<8x1xf32>
    %cst_3 = arith.constant 0.00392156886 : f32
    %10 = vector.broadcast %cst_3 : f32 to vector<8x1xf32>
    %11 = arith.mulf %9, %10 : vector<8x1xf32>
    %12 = math.sqrt %11 : vector<8x1xf32>
    %cst_4 = arith.constant 0.316227764 : f32
    %13 = vector.broadcast %cst_4 : f32 to vector<8x1xf32>
    %14 = arith.mulf %12, %13 : vector<8x1xf32>
    %15 = vector.shape_cast %14 : vector<8x1xf32> to vector<1x8x1xf32>
    %cst_5 = arith.constant dense<0.000000e+00> : vector<1xf32>
    %16 = vector.multi_reduction <add>, %15, %cst_5 [1, 2] : vector<1x8x1xf32> to vector<1xf32>
    %17 = vector.shape_cast %16 : vector<1xf32> to vector<1x1x1xf32>
    %18 = vector.extract %17[0, 0, 0] : f32 from vector<1x1x1xf32>
    %19 = vector.broadcast %18 : f32 to vector<1x1xf32>
    %cst_6 = arith.constant 1.250000e-01 : f32
    %20 = vector.broadcast %cst_6 : f32 to vector<1x1xf32>
    %21 = arith.mulf %19, %20 : vector<1x1xf32>
    %c0_7 = arith.constant 0 : index
    %22 = memref.load %arg0[%c0_7] : memref<1xi32, #tpu.memory_space<smem>>
    "tpu.prng_set_seed_32"(%22) : (i32) -> ()
    %23 = "tpu.prng_random_bits"() : () -> vector<8x256xi32>
    %c16777215_i32 = arith.constant 16777215 : i32
    %24 = vector.broadcast %c16777215_i32 : i32 to vector<8x256xi32>
    %25 = arith.andi %23, %24 : vector<8x256xi32>
    %26 = arith.sitofp %25 : vector<8x256xi32> to vector<8x256xf32>
    %cst_8 = arith.constant 5.000000e-01 : f32
    %27 = vector.broadcast %cst_8 : f32 to vector<8x256xf32>
    %28 = arith.addf %26, %27 : vector<8x256xf32>
    %cst_9 = arith.constant 5.96046448E-8 : f32
    %29 = vector.broadcast %cst_9 : f32 to vector<8x256xf32>
    %30 = arith.mulf %28, %29 : vector<8x256xf32>
    %cst_10 = arith.constant 5.000000e-01 : f32
    %31 = vector.broadcast %cst_10 : f32 to vector<8x256xf32>
    %32 = arith.subf %30, %31 : vector<8x256xf32>
    %cst_11 = arith.constant 3.14159274 : f32
    %33 = vector.broadcast %cst_11 : f32 to vector<8x256xf32>
    %34 = arith.mulf %32, %33 : vector<8x256xf32>
    %35 = math.sin %34 : vector<8x256xf32>
    %36 = math.cos %34 : vector<8x256xf32>
    %37 = arith.divf %35, %36 : vector<8x256xf32>
    %38 = vector.broadcast %21 : vector<1x1xf32> to vector<8x256xf32>
    %39 = arith.mulf %38, %37 : vector<8x256xf32>
    %40 = arith.addf %0, %39 : vector<8x256xf32>
    %c0_12 = arith.constant 0 : index
    %c0_13 = arith.constant 0 : index
    %41 = vector.load %arg2[%c0_12, %c0_13] : memref<8x256xf32, #tpu.memory_space<vmem>>, vector<8x256xf32>
    tpu.vector_store %arg2[%c0_12, %c0_13], %40 {strides = array<i32>} : memref<8x256xf32, #tpu.memory_space<vmem>>, vector<8x256xf32>,
    return
  }
}

module attributes {stable_mosaic.version = 11 : i64} {
  func.func @_row_std_kernel(%arg0: i32, %arg1: memref<8x256xf32, #tpu.memory_space<vmem>>, %arg2: memref<8x1xf32, #tpu.memory_space<vmem>>) attributes {dimension_semantics = [#tpu.dimension_semantics<parallel>], iteration_bounds = array<i64: 1>, scalar_prefetch = 0 : i64, scratch_operands = 0 : i64, tpu.core_type = #tpu.core_type<tc>, window_params = [{transform_indices = @transform_0, window_bounds = array<i64: 8, 256>}, {transform_indices = @transform_1, window_bounds = array<i64: 8, 1>}]} {
    %c0 = arith.constant 0 : index
    %c0_0 = arith.constant 0 : index
    %0 = vector.load %arg1[%c0, %c0_0] : memref<8x256xf32, #tpu.memory_space<vmem>>, vector<8x256xf32>
    %cst = arith.constant dense<0.000000e+00> : vector<8xf32>
    %1 = vector.multi_reduction <add>, %0, %cst [1] : vector<8x256xf32> to vector<8xf32>
    %2 = vector.shape_cast %1 : vector<8xf32> to vector<8x1xf32>
    %cst_1 = arith.constant 3.906250e-03 : f32
    %3 = vector.broadcast %cst_1 : f32 to vector<8x1xf32>
    %4 = arith.mulf %2, %3 : vector<8x1xf32>
    %5 = vector.broadcast %4 : vector<8x1xf32> to vector<8x256xf32>
    %6 = arith.subf %0, %5 : vector<8x256xf32>
    %7 = arith.mulf %6, %6 : vector<8x256xf32>
    %cst_2 = arith.constant dense<0.000000e+00> : vector<8xf32>
    %8 = vector.multi_reduction <add>, %7, %cst_2 [1] : vector<8x256xf32> to vector<8xf32>
    %9 = vector.shape_cast %8 : vector<8xf32> to vector<8x1xf32>
    %cst_3 = arith.constant 0.00392156886 : f32
    %10 = vector.broadcast %cst_3 : f32 to vector<8x1xf32>
    %11 = arith.mulf %9, %10 : vector<8x1xf32>
    %12 = math.sqrt %11 : vector<8x1xf32>
    %cst_4 = arith.constant 0.316227764 : f32
    %13 = vector.broadcast %cst_4 : f32 to vector<8x1xf32>
    %14 = arith.mulf %12, %13 : vector<8x1xf32>
    %c0_5 = arith.constant 0 : index
    %c0_6 = arith.constant 0 : index
    %15 = vector.load %arg2[%c0_5, %c0_6] : memref<8x1xf32, #tpu.memory_space<vmem>>, vector<8x1xf32>
    tpu.vector_store %arg2[%c0_5, %c0_6], %14 {strides = array<i32>} : memref<8x1xf32, #tpu.memory_space<vmem>>, vector<8x1xf32>,
    return
  }
  func.func @transform_0(%arg0: i32) -> (i32, i32) {
    %c0_i32 = arith.constant 0 : i32
    %c0_i32_0 = arith.constant 0 : i32
    return %arg0, %c0_i32 : i32, i32
  }
  func.func @transform_1(%arg0: i32) -> (i32, i32) {
    %c0_i32 = arith.constant 0 : i32
    %c0_i32_0 = arith.constant 0 : i32
    return %arg0, %c0_i32 : i32, i32
  }
}

</mosaic_0001>

<llo_original>
// kernel: tpu_custom_call.1
$region0: #{tpu_custom_call.1}
  #allocation0 [shape = 'u32[]', space=smem, size = 0x4, offset = 0x4, fixed_abs, tag = 'smem constant byte address 0x4 - core index']
  #allocation1 [shape = 'u32[144,128]{1,0:T(1,128)}', space=vmem, size = 0x12000, scoped, tag = 'internal scratch']
  #allocation2 [shape = 's32[1]{0:T(128)S(6)}', space=smem, size = 0x200, scoped, tag = 'scoped memory for tpu_custom_call.1']
  %s0 = inlined_call_operand.<no memory space> [shape: s32[1], index: 0, kind: input, shape index: {}]
  %s1 = inlined_call_operand.hbm [shape: f32[8,256], index: 1, kind: input, shape index: {}]
  %s2 = inlined_call_operand.hbm [shape: f32[8,256], index: 2, kind: output, shape index: {}]
  %s3 = sld [smem:[#allocation0]]
  $region22: #{tpu_custom_call.1} parent=0
    _
  %s5 = ssub.s32 1, %s3
  %s6 = scalar_select 0, %s5, %s3
  %7 = sst [smem:[#allocation2]] %s0
  $region1: #{tpu_custom_call.1} parent=0
    #allocation3 [shape = 'u8[8192]{0}', space=vmem, size = 0x2000, scoped, tag = 'input window, operand 1, single buffered']
    #allocation4 [shape = 's32[1]{0}', space=sflag, size = 0x4, scoped, tag = 'scoped memory for tpu_custom_call.1']
    #allocation5 [shape = 's32[1]{0}', space=sflag, size = 0x4, scoped, tag = 'scoped memory for tpu_custom_call.1']
    #allocation6 [shape = 'u8[8192]{0}', space=vmem, size = 0x2000, scoped, tag = 'output window, operand 0, single buffered']
    %8 = vsyncpa [#allocation4], 0
    %9 = vsyncpa [#allocation5], 0
    // Predicated region
    $region2: #{tpu_custom_call.1} parent=1 // pred_check
      _
    $region3: #{tpu_custom_call.1} parent=1 // pred_check_branch
      %11 = sbr.rel (0) target = $region5
    $region4: #{tpu_custom_call.1} parent=1 // pred_region
      _
    $region5: #{tpu_custom_call.1} parent=1 // pred_fallthru
      _
    // Predicated region
    $region6: #{tpu_custom_call.1} parent=1 // pred_check
      _
    $region7: #{tpu_custom_call.1} parent=1 // pred_check_branch
      %13 = sbr.rel (0) target = $region9
    $region8: #{tpu_custom_call.1} parent=1 // pred_region
      %s15 = ssub.s32 256, 256
      %16 = vsyncadd [#allocation4], %s15
      %s18 = sshll.u32 [#allocation3], 4
      %s19 = int_to_ptr.vmem [resolvable:$true] %s18
      %21 = dma.hbm_to_vmem [thread:$0]  %s1, 256, %s19, [#allocation4]
    $region9: #{tpu_custom_call.1} parent=1 // pred_fallthru
      _
    // Predicated region
    $region10: #{tpu_custom_call.1} parent=1 // pred_check
      _
    $region11: #{tpu_custom_call.1} parent=1 // pred_check_branch
      %23 = sbr.rel (0) target = $region13
    $region12: #{tpu_custom_call.1} parent=1 // pred_region
      %24 = dma.done [#allocation4], 256
    $region13: #{tpu_custom_call.1} parent=1 // pred_fallthru
      _
    %v25 = vld [vmem:[#allocation3] sm:$0xff]
    %v26 = vld [vmem:[#allocation3 + $0x8] sm:$0xff]
    %v27 = vadd.f32 %v25, %v26
    %28 = vadd.xlane.f32.xlu0 %v27
    %v29 = vpop.xlane.xlu0 %28
    %v30 = vmul.f32 %v29, 0.00390625
    %v31 = vsub.f32 %v25, %v30
    %v32 = vsub.f32 %v26, %v30
    %v33 = vmul.f32 %v31, %v31
    %v34 = vmul.f32 %v32, %v32
    %v35 = vadd.f32 %v33, %v34
    %36 = vadd.xlane.f32.xlu0 %v35
    %v37 = vpop.xlane.xlu0 %36
    %v38 = vmul.f32 %v37, 0.003921569
    %v39 = vrsqrt.pop %v38
    %v40 = vmul.f32 %v38, %v39
    %vm41 = vcmp.eq.f32.partialorder %v38, inf
    %v42 = vsel %vm41, %v38, %v40
    %vm43 = vcmp.eq.f32.partialorder %v38, 0.0
    %v44 = vand.u32 %v38, 2147483648
    %v45 = vsel %vm43, %v44, %v42
    %v46 = vmul.f32 %v45, 0.31622776
    %vm47 = vcmask 7168
    %v48 = vsel %vm47, %v46, 0.0
    %49 = vadd.xlane.f32.xlu0 %v48
    %v50 = vpop.xlane.xlu0 %49
    %v51 = vrot.slane %v50, 4
    %v52 = vadd.f32 %v50, %v51
    %v53 = vrot.slane %v52, 2
    %v54 = vadd.f32 %v52, %v53
    %v55 = vrot.slane %v54, 1
    %v56 = vadd.f32 %v54, %v55
    %s57 = vtos %v56
    %v58 = vstv %s57
    %v59 = vmul.f32 %v58, 0.125
    %s60 = sld [smem:[#allocation2]]
    %v61 = vlaneseq
    %v62 = vstv %s60
    %v63 = vxor.u32 %v62, %v62
    %v64 = vxor.u32 %v63, 466688986
    %v65 = vadd.s32 %v61, %v62
    %v66 = vadd.s32 %v65, %v65
    %v67 = vshll.u32 %v65, 13
    %v68 = vshrl.u32 %v65, 19
    %v69 = vor.u32 %v67, %v68
    %v70 = vxor.u32 %v66, %v69
    %v71 = vadd.s32 %v66, %v70
    %v72 = vshll.u32 %v70, 15
    %v73 = vshrl.u32 %v70, 17
    %v74 = vor.u32 %v72, %v73
    %v75 = vxor.u32 %v71, %v74
    %v76 = vadd.s32 %v71, %v75
    %v77 = vshll.u32 %v75, 26
    %v78 = vshrl.u32 %v75, 6
    %v79 = vor.u32 %v77, %v78
    %v80 = vxor.u32 %v76, %v79
    %v81 = vadd.s32 %v76, %v80
    %v82 = vshll.u32 %v80, 6
    %v83 = vshrl.u32 %v80, 26
    %v84 = vor.u32 %v82, %v83
    %v85 = vxor.u32 %v81, %v84
    %v86 = vadd.s32 %v81, %v62
    %v87 = vadd.s32 %v85, %v64
    %v88 = vadd.s32 %v87, 1
    %v89 = vadd.s32 %v86, %v88
    %v90 = vshll.u32 %v88, 17
    %v91 = vshrl.u32 %v88, 15
    %v92 = vor.u32 %v90, %v91
    %v93 = vxor.u32 %v89, %v92
    %v94 = vadd.s32 %v89, %v93
    %v95 = vshll.u32 %v93, 29
    %v96 = vshrl.u32 %v93, 3
    %v97 = vor.u32 %v95, %v96
    %v98 = vxor.u32 %v94, %v97
    %v99 = vadd.s32 %v94, %v98
    %v100 = vshll.u32 %v98, 16
    %v101 = vshrl.u32 %v98, 16
    %v102 = vor.u32 %v100, %v101
    %v103 = vxor.u32 %v99, %v102
    %v104 = vadd.s32 %v99, %v103
    %v105 = vshll.u32 %v103, 24
    %v106 = vshrl.u32 %v103, 8
    %v107 = vor.u32 %v105, %v106
    %v108 = vxor.u32 %v104, %v107
    %v109 = vadd.s32 %v104, %v64
    %v110 = vadd.s32 %v108, %v62
    %v111 = vadd.s32 %v110, 2
    %v112 = vadd.s32 %v109, %v111
    %v113 = vshll.u32 %v111, 13
    %v114 = vshrl.u32 %v111, 19
    %v115 = vor.u32 %v113, %v114
    %v116 = vxor.u32 %v112, %v115
    %v117 = vadd.s32 %v112, %v116
    %v118 = vshll.u32 %v116, 15
    %v119 = vshrl.u32 %v116, 17
    %v120 = vor.u32 %v118, %v119
    %v121 = vxor.u32 %v117, %v120
    %v122 = vadd.s32 %v117, %v121
    %v123 = vshll.u32 %v121, 26
    %v124 = vshrl.u32 %v121, 6
    %v125 = vor.u32 %v123, %v124
    %v126 = vxor.u32 %v122, %v125
    %v127 = vadd.s32 %v122, %v126
    %v128 = vshll.u32 %v126, 6
    %v129 = vshrl.u32 %v126, 26
    %v130 = vor.u32 %v128, %v129
    %v131 = vxor.u32 %v127, %v130
    %v132 = vadd.s32 %v127, %v62
    %v133 = vadd.s32 %v131, %v62
    %v134 = vadd.s32 %v133, 3
    %v135 = vadd.s32 %v132, %v134
    %v136 = vshll.u32 %v134, 17
    %v137 = vshrl.u32 %v134, 15
    %v138 = vor.u32 %v136, %v137
    %v139 = vxor.u32 %v135, %v138
    %v140 = vadd.s32 %v135, %v139
    %v141 = vshll.u32 %v139, 29
    %v142 = vshrl.u32 %v139, 3
    %v143 = vor.u32 %v141, %v142
    %v144 = vxor.u32 %v140, %v143
    %v145 = vadd.s32 %v140, %v144
    %v146 = vshll.u32 %v144, 16
    %v147 = vshrl.u32 %v144, 16
    %v148 = vor.u32 %v146, %v147
    %v149 = vxor.u32 %v145, %v148
    %v150 = vadd.s32 %v145, %v149
    %v151 = vshll.u32 %v149, 24
    %v152 = vshrl.u32 %v149, 8
    %v153 = vor.u32 %v151, %v152
    %v154 = vxor.u32 %v150, %v153
    %v155 = vadd.s32 %v150, %v62
    %v156 = vadd.s32 %v154, %v64
    %v157 = vadd.s32 %v156, 4
    %v158 = vadd.s32 %v155, %v157
    %v159 = vshll.u32 %v157, 13
    %v160 = vshrl.u32 %v157, 19
    %v161 = vor.u32 %v159, %v160
    %v162 = vxor.u32 %v158, %v161
    %v163 = vadd.s32 %v158, %v162
    %v164 = vshll.u32 %v162, 15
    %v165 = vshrl.u32 %v162, 17
    %v166 = vor.u32 %v164, %v165
    %v167 = vxor.u32 %v163, %v166
    %v168 = vadd.s32 %v163, %v167
    %v169 = vshll.u32 %v167, 26
    %v170 = vshrl.u32 %v167, 6
    %v171 = vor.u32 %v169, %v170
    %v172 = vxor.u32 %v168, %v171
    %v173 = vadd.s32 %v168, %v172
    %v174 = vshll.u32 %v172, 6
    %v175 = vshrl.u32 %v172, 26
    %v176 = vor.u32 %v174, %v175
    %v177 = vxor.u32 %v173, %v176
    %v178 = vadd.s32 %v173, %v64
    %v179 = vadd.s32 %v177, %v62
    %v180 = vadd.s32 %v179, 5
    %v181 = vxor.u32 %v178, %v180
    %182 = set.rngseed %v181
    %v183 = vrng
    %v184 = vrng
    %v185 = vand.u32 %v183, 16777215
    %v186 = vand.u32 %v184, 16777215
    %v187 = vcvt.s32.f32 %v185
    %v188 = vcvt.s32.f32 %v186
    %v189 = vadd.f32 %v187, 0.5
    %v190 = vadd.f32 %v188, 0.5
    %v191 = vmul.f32 %v189, 5.9604645e-08
    %v192 = vmul.f32 %v190, 5.9604645e-08
    %v193 = vsub.f32 %v191, 0.5
    %v194 = vsub.f32 %v192, 0.5
    %v195 = vmul.f32 %v193, 3.1415927
    %v196 = vmul.f32 %v194, 3.1415927
    %v197 = vand.u32 2147483647, %v195
    %vm198 = vcmp.le.f32.partialorder %v197, 0.7853982
    %vm199 = vcmp.lt.s32.totalorder %v195, 0
    %v200 = vand.u32 %v195, 2139095040
    %v201 = vshrl.u32 %v200, 23
    %v202 = vsub.s32 %v201, 127
    %v203 = vand.u32 2147483647, %v195
    %v204 = vand.u32 %v203, 8388607
    %v205 = vor.u32 %v204, 8388608
    %v206 = vsub.s32 0, %v205
    %v207 = vadd.s32 %v202, 1
    %vm208 = vcmp.gt.s32.totalorder %v207, 0
    %v209 = vsel %vm208, %v207, 0
    %v210 = vshrl.u32 %v209, 5
    %v211 = vand.u32 %v209, 31
    %v212 = vsub.s32 32, %v211
    %v213 = vshrl.u32 683565275, %v212
    %v214 = vshll.u32 683565275, %v211
    %v215 = vshrl.u32 2475754826, %v212
    %v216 = vor.u32 %v214, %v215
    %v217 = vshll.u32 2475754826, %v211
    %v218 = vshrl.u32 2131351028, %v212
    %v219 = vor.u32 %v217, %v218
    %v220 = vshll.u32 2131351028, %v211
    %v221 = vshrl.u32 2102212464, %v212
    %v222 = vor.u32 %v220, %v221
    %v223 = vshll.u32 2102212464, %v211
    %v224 = vshrl.u32 920167782, %v212
    %v225 = vor.u32 %v223, %v224
    %v226 = vshll.u32 920167782, %v211
    %v227 = vshrl.u32 1326507024, %v212
    %v228 = vor.u32 %v226, %v227
    %vm229 = vcmp.lt.s32.totalorder %v210, 1
    %vm230 = vcmp.lt.s32.totalorder %v210, 2
    %vm231 = vcmp.lt.s32.totalorder %v210, 3
    %vm232 = vcmp.lt.s32.totalorder %v210, 4
    %v233 = vsel %vm229, %v213, %v216
    %v234 = vsel %vm232, %v222, 2102212464
    %v235 = vsel %vm231, %v219, %v234
    %v236 = vsel %vm230, %v233, %v235
    %v237 = vsel %vm229, %v216, %v219
    %v238 = vsel %vm232, %v225, 920167782
    %v239 = vsel %vm231, %v222, %v238
    %v240 = vsel %vm230, %v237, %v239
    %v241 = vsel %vm229, %v219, %v222
    %v242 = vsel %vm232, %v228, 1326507024
    %v243 = vsel %vm231, %v225, %v242
    %v244 = vsel %vm230, %v241, %v243
    %v245 = vshll.u32 %v205, 8
    %v246 = vmul.u32.u64.compose %v245, %v244
    %v247 = vextract.low.u32 %v246
    %v248 = vextract.high.u32 %v246
    %v249 = vmul.u32.u64.compose %v245, %v240
    %v250 = vextract.low.u32 %v249
    %v251 = vextract.high.u32 %v249
    %v252 = vmul.u32 %v245, %v236
    %v253 = vadd.s32 %v248, %v250
    %vm254 = vc.u32 %v248, %v250
    %v255 = vadd.s32 %v251, 1
    %v256 = vsel %vm254, %v255, %v251
    %v257 = vadd.s32 %v252, %v256
    %v258 = vadd.s32 %v257, 536870912
    %v259 = vshrl.u32 %v258, 30
    %v260 = vshll.u32 %v259, 30
    %v261 = vsub.s32 %v257, %v260
    %vm262 = vcmp.lt.s32.totalorder %v261, 0
    %v263 = vsub.s32 0, %v261
    %v264 = vsel %vm262, %v263, %v261
    %v265 = vclz %v264
    %v266 = vsub.s32 %v265, 2
    %vm267 = vcmp.gt.s32.totalorder 0, %v266
    %v268 = vsel %vm267, 0, %v266
    %v269 = vsub.s32 32, %v268
    %v270 = vshll.u32 %v261, %v268
    %v271 = vshrl.u32 %v253, %v269
    %v272 = vor.u32 %v270, %v271
    %v273 = vsub.s32 4294967266, %v268
    %v274 = vadd.s32 %v273, 127
    %v275 = vshll.u32 %v274, 23
    %v276 = vor.u32 4788187, %v275
    %v277 = vand.u32 2147483647, %v276
    %v279 = vcvt.s32.f32 %v272
    %v280 = vmul.f32 %v279, %v277
    %v281 = vxor.u32 %v280, 2147483648
    %v282 = vsel %vm199, %v281, %v280
    %v283 = vsub.s32 4, %v259
    %v284 = vsel %vm199, %v283, %v259
    %v285 = vsel %vm198, %v195, %v282
    %v286 = vsel %vm198, 0, %v284
    %v287 = vcosq.f32.pop %v285
    %v288 = vsinq.f32.pop %v285
    %vm289 = vweird.f32 %v195
    %v290 = vadd.s32 %v286, 3
    %v291 = vand.u32 %v290, 3
    %vm292 = vcmp.lt.s32.totalorder %v291, 2
    %vm293 = vcmp.eq.s32.totalorder %v291, 0
    %v294 = vxor.u32 %v288, 2147483648
    %v295 = vsel %vm293, %v287, %v294
    %vm296 = vcmp.eq.s32.totalorder %v291, 2
    %v297 = vxor.u32 %v287, 2147483648
    %v298 = vsel %vm296, %v297, %v288
    %v299 = vsel %vm292, %v295, %v298
    %v300 = vsel %vm289, nan, %v299
    %v301 = vand.u32 2147483647, %v196
    %vm302 = vcmp.le.f32.partialorder %v301, 0.7853982
    %vm303 = vcmp.lt.s32.totalorder %v196, 0
    %v304 = vand.u32 %v196, 2139095040
    %v305 = vshrl.u32 %v304, 23
    %v306 = vsub.s32 %v305, 127
    %v307 = vand.u32 2147483647, %v196
    %v308 = vand.u32 %v307, 8388607
    %v309 = vor.u32 %v308, 8388608
    %v310 = vsub.s32 0, %v309
    %v311 = vadd.s32 %v306, 1
    %vm312 = vcmp.gt.s32.totalorder %v311, 0
    %v313 = vsel %vm312, %v311, 0
    %v314 = vshrl.u32 %v313, 5
    %v315 = vand.u32 %v313, 31
    %v316 = vsub.s32 32, %v315
    %v317 = vshrl.u32 683565275, %v316
    %v318 = vshll.u32 683565275, %v315
    %v319 = vshrl.u32 2475754826, %v316
    %v320 = vor.u32 %v318, %v319
    %v321 = vshll.u32 2475754826, %v315
    %v322 = vshrl.u32 2131351028, %v316
    %v323 = vor.u32 %v321, %v322
    %v324 = vshll.u32 2131351028, %v315
    %v325 = vshrl.u32 2102212464, %v316
    %v326 = vor.u32 %v324, %v325
    %v327 = vshll.u32 2102212464, %v315
    %v328 = vshrl.u32 920167782, %v316
    %v329 = vor.u32 %v327, %v328
    %v330 = vshll.u32 920167782, %v315
    %v331 = vshrl.u32 1326507024, %v316
    %v332 = vor.u32 %v330, %v331
    %vm333 = vcmp.lt.s32.totalorder %v314, 1
    %vm334 = vcmp.lt.s32.totalorder %v314, 2
    %vm335 = vcmp.lt.s32.totalorder %v314, 3
    %vm336 = vcmp.lt.s32.totalorder %v314, 4
    %v337 = vsel %vm333, %v317, %v320
    %v338 = vsel %vm336, %v326, 2102212464
    %v339 = vsel %vm335, %v323, %v338
    %v340 = vsel %vm334, %v337, %v339
    %v341 = vsel %vm333, %v320, %v323
    %v342 = vsel %vm336, %v329, 920167782
    %v343 = vsel %vm335, %v326, %v342
    %v344 = vsel %vm334, %v341, %v343
    %v345 = vsel %vm333, %v323, %v326
    %v346 = vsel %vm336, %v332, 1326507024
    %v347 = vsel %vm335, %v329, %v346
    %v348 = vsel %vm334, %v345, %v347
    %v349 = vshll.u32 %v309, 8
    %v350 = vmul.u32.u64.compose %v349, %v348
    %v351 = vextract.low.u32 %v350
    %v352 = vextract.high.u32 %v350
    %v353 = vmul.u32.u64.compose %v349, %v344
    %v354 = vextract.low.u32 %v353
    %v355 = vextract.high.u32 %v353
    %v356 = vmul.u32 %v349, %v340
    %v357 = vadd.s32 %v352, %v354
    %vm358 = vc.u32 %v352, %v354
    %v359 = vadd.s32 %v355, 1
    %v360 = vsel %vm358, %v359, %v355
    %v361 = vadd.s32 %v356, %v360
    %v362 = vadd.s32 %v361, 536870912
    %v363 = vshrl.u32 %v362, 30
    %v364 = vshll.u32 %v363, 30
    %v365 = vsub.s32 %v361, %v364
    %vm366 = vcmp.lt.s32.totalorder %v365, 0
    %v367 = vsub.s32 0, %v365
    %v368 = vsel %vm366, %v367, %v365
    %v369 = vclz %v368
    %v370 = vsub.s32 %v369, 2
    %vm371 = vcmp.gt.s32.totalorder 0, %v370
    %v372 = vsel %vm371, 0, %v370
    %v373 = vsub.s32 32, %v372
    %v374 = vshll.u32 %v365, %v372
    %v375 = vshrl.u32 %v357, %v373
    %v376 = vor.u32 %v374, %v375
    %v377 = vsub.s32 4294967266, %v372
    %v378 = vadd.s32 %v377, 127
    %v379 = vshll.u32 %v378, 23
    %v380 = vor.u32 4788187, %v379
    %v381 = vand.u32 2147483647, %v380
    %v383 = vcvt.s32.f32 %v376
    %v384 = vmul.f32 %v383, %v381
    %v385 = vxor.u32 %v384, 2147483648
    %v386 = vsel %vm303, %v385, %v384
    %v387 = vsub.s32 4, %v363
    %v388 = vsel %vm303, %v387, %v363
    %v389 = vsel %vm302, %v196, %v386
    %v390 = vsel %vm302, 0, %v388
    %v391 = vcosq.f32.pop %v389
    %v392 = vsinq.f32.pop %v389
    %vm393 = vweird.f32 %v196
    %v394 = vadd.s32 %v390, 3
    %v395 = vand.u32 %v394, 3
    %vm396 = vcmp.lt.s32.totalorder %v395, 2
    %vm397 = vcmp.eq.s32.totalorder %v395, 0
    %v398 = vxor.u32 %v392, 2147483648
    %v399 = vsel %vm397, %v391, %v398
    %vm400 = vcmp.eq.s32.totalorder %v395, 2
    %v401 = vxor.u32 %v391, 2147483648
    %v402 = vsel %vm400, %v401, %v392
    %v403 = vsel %vm396, %v399, %v402
    %v404 = vsel %vm393, nan, %v403
    %v405 = vand.u32 2147483647, %v195
    %vm406 = vcmp.le.f32.partialorder %v405, 0.7853982
    %vm407 = vcmp.lt.s32.totalorder %v195, 0
    %v408 = vand.u32 %v195, 2139095040
    %v409 = vshrl.u32 %v408, 23
    %v410 = vsub.s32 %v409, 127
    %v411 = vand.u32 2147483647, %v195
    %v412 = vand.u32 %v411, 8388607
    %v413 = vor.u32 %v412, 8388608
    %v414 = vsub.s32 0, %v413
    %v415 = vadd.s32 %v410, 1
    %vm416 = vcmp.gt.s32.totalorder %v415, 0
    %v417 = vsel %vm416, %v415, 0
    %v418 = vshrl.u32 %v417, 5
    %v419 = vand.u32 %v417, 31
    %v420 = vsub.s32 32, %v419
    %v421 = vshrl.u32 683565275, %v420
    %v422 = vshll.u32 683565275, %v419
    %v423 = vshrl.u32 2475754826, %v420
    %v424 = vor.u32 %v422, %v423
    %v425 = vshll.u32 2475754826, %v419
    %v426 = vshrl.u32 2131351028, %v420
    %v427 = vor.u32 %v425, %v426
    %v428 = vshll.u32 2131351028, %v419
    %v429 = vshrl.u32 2102212464, %v420
    %v430 = vor.u32 %v428, %v429
    %v431 = vshll.u32 2102212464, %v419
    %v432 = vshrl.u32 920167782, %v420
    %v433 = vor.u32 %v431, %v432
    %v434 = vshll.u32 920167782, %v419
    %v435 = vshrl.u32 1326507024, %v420
    %v436 = vor.u32 %v434, %v435
    %vm437 = vcmp.lt.s32.totalorder %v418, 1
    %vm438 = vcmp.lt.s32.totalorder %v418, 2
    %vm439 = vcmp.lt.s32.totalorder %v418, 3
    %vm440 = vcmp.lt.s32.totalorder %v418, 4
    %v441 = vsel %vm437, %v421, %v424
    %v442 = vsel %vm440, %v430, 2102212464
    %v443 = vsel %vm439, %v427, %v442
    %v444 = vsel %vm438, %v441, %v443
    %v445 = vsel %vm437, %v424, %v427
    %v446 = vsel %vm440, %v433, 920167782
    %v447 = vsel %vm439, %v430, %v446
    %v448 = vsel %vm438, %v445, %v447
    %v449 = vsel %vm437, %v427, %v430
    %v450 = vsel %vm440, %v436, 1326507024
    %v451 = vsel %vm439, %v433, %v450
    %v452 = vsel %vm438, %v449, %v451
    %v453 = vshll.u32 %v413, 8
    %v454 = vmul.u32.u64.compose %v453, %v452
    %v455 = vextract.low.u32 %v454
    %v456 = vextract.high.u32 %v454
    %v457 = vmul.u32.u64.compose %v453, %v448
    %v458 = vextract.low.u32 %v457
    %v459 = vextract.high.u32 %v457
    %v460 = vmul.u32 %v453, %v444
    %v461 = vadd.s32 %v456, %v458
    %vm462 = vc.u32 %v456, %v458
    %v463 = vadd.s32 %v459, 1
    %v464 = vsel %vm462, %v463, %v459
    %v465 = vadd.s32 %v460, %v464
    %v466 = vadd.s32 %v465, 536870912
    %v467 = vshrl.u32 %v466, 30
    %v468 = vshll.u32 %v467, 30
    %v469 = vsub.s32 %v465, %v468
    %vm470 = vcmp.lt.s32.totalorder %v469, 0
    %v471 = vsub.s32 0, %v469
    %v472 = vsel %vm470, %v471, %v469
    %v473 = vclz %v472
    %v474 = vsub.s32 %v473, 2
    %vm475 = vcmp.gt.s32.totalorder 0, %v474
    %v476 = vsel %vm475, 0, %v474
    %v477 = vsub.s32 32, %v476
    %v478 = vshll.u32 %v469, %v476
    %v479 = vshrl.u32 %v461, %v477
    %v480 = vor.u32 %v478, %v479
    %v481 = vsub.s32 4294967266, %v476
    %v482 = vadd.s32 %v481, 127
    %v483 = vshll.u32 %v482, 23
    %v484 = vor.u32 4788187, %v483
    %v485 = vand.u32 2147483647, %v484
    %v487 = vcvt.s32.f32 %v480
    %v488 = vmul.f32 %v487, %v485
    %v489 = vxor.u32 %v488, 2147483648
    %v490 = vsel %vm407, %v489, %v488
    %v491 = vsub.s32 4, %v467
    %v492 = vsel %vm407, %v491, %v467
    %v493 = vsel %vm406, %v195, %v490
    %v494 = vsel %vm406, 0, %v492
    %v495 = vcosq.f32.pop %v493
    %v496 = vsinq.f32.pop %v493
    %vm497 = vweird.f32 %v195
    %v498 = vand.u32 %v494, 3
    %vm499 = vcmp.lt.s32.totalorder %v498, 2
    %vm500 = vcmp.eq.s32.totalorder %v498, 0
    %v501 = vxor.u32 %v496, 2147483648
    %v502 = vsel %vm500, %v495, %v501
    %vm503 = vcmp.eq.s32.totalorder %v498, 2
    %v504 = vxor.u32 %v495, 2147483648
    %v505 = vsel %vm503, %v504, %v496
    %v506 = vsel %vm499, %v502, %v505
    %v507 = vsel %vm497, nan, %v506
    %v508 = vand.u32 2147483647, %v196
    %vm509 = vcmp.le.f32.partialorder %v508, 0.7853982
    %vm510 = vcmp.lt.s32.totalorder %v196, 0
    %v511 = vand.u32 %v196, 2139095040
    %v512 = vshrl.u32 %v511, 23
    %v513 = vsub.s32 %v512, 127
    %v514 = vand.u32 2147483647, %v196
    %v515 = vand.u32 %v514, 8388607
    %v516 = vor.u32 %v515, 8388608
    %v517 = vsub.s32 0, %v516
    %v518 = vadd.s32 %v513, 1
    %vm519 = vcmp.gt.s32.totalorder %v518, 0
    %v520 = vsel %vm519, %v518, 0
    %v521 = vshrl.u32 %v520, 5
    %v522 = vand.u32 %v520, 31
    %v523 = vsub.s32 32, %v522
    %v524 = vshrl.u32 683565275, %v523
    %v525 = vshll.u32 683565275, %v522
    %v526 = vshrl.u32 2475754826, %v523
    %v527 = vor.u32 %v525, %v526
    %v528 = vshll.u32 2475754826, %v522
    %v529 = vshrl.u32 2131351028, %v523
    %v530 = vor.u32 %v528, %v529
    %v531 = vshll.u32 2131351028, %v522
    %v532 = vshrl.u32 2102212464, %v523
    %v533 = vor.u32 %v531, %v532
    %v534 = vshll.u32 2102212464, %v522
    %v535 = vshrl.u32 920167782, %v523
    %v536 = vor.u32 %v534, %v535
    %v537 = vshll.u32 920167782, %v522
    %v538 = vshrl.u32 1326507024, %v523
    %v539 = vor.u32 %v537, %v538
    %vm540 = vcmp.lt.s32.totalorder %v521, 1
    %vm541 = vcmp.lt.s32.totalorder %v521, 2
    %vm542 = vcmp.lt.s32.totalorder %v521, 3
    %vm543 = vcmp.lt.s32.totalorder %v521, 4
    %v544 = vsel %vm540, %v524, %v527
    %v545 = vsel %vm543, %v533, 2102212464
    %v546 = vsel %vm542, %v530, %v545
    %v547 = vsel %vm541, %v544, %v546
    %v548 = vsel %vm540, %v527, %v530
    %v549 = vsel %vm543, %v536, 920167782
    %v550 = vsel %vm542, %v533, %v549
    %v551 = vsel %vm541, %v548, %v550
    %v552 = vsel %vm540, %v530, %v533
    %v553 = vsel %vm543, %v539, 1326507024
    %v554 = vsel %vm542, %v536, %v553
    %v555 = vsel %vm541, %v552, %v554
    %v556 = vshll.u32 %v516, 8
    %v557 = vmul.u32.u64.compose %v556, %v555
    %v558 = vextract.low.u32 %v557
    %v559 = vextract.high.u32 %v557
    %v560 = vmul.u32.u64.compose %v556, %v551
    %v561 = vextract.low.u32 %v560
    %v562 = vextract.high.u32 %v560
    %v563 = vmul.u32 %v556, %v547
    %v564 = vadd.s32 %v559, %v561
    %vm565 = vc.u32 %v559, %v561
    %v566 = vadd.s32 %v562, 1
    %v567 = vsel %vm565, %v566, %v562
    %v568 = vadd.s32 %v563, %v567
    %v569 = vadd.s32 %v568, 536870912
    %v570 = vshrl.u32 %v569, 30
    %v571 = vshll.u32 %v570, 30
    %v572 = vsub.s32 %v568, %v571
    %vm573 = vcmp.lt.s32.totalorder %v572, 0
    %v574 = vsub.s32 0, %v572
    %v575 = vsel %vm573, %v574, %v572
    %v576 = vclz %v575
    %v577 = vsub.s32 %v576, 2
    %vm578 = vcmp.gt.s32.totalorder 0, %v577
    %v579 = vsel %vm578, 0, %v577
    %v580 = vsub.s32 32, %v579
    %v581 = vshll.u32 %v572, %v579
    %v582 = vshrl.u32 %v564, %v580
    %v583 = vor.u32 %v581, %v582
    %v584 = vsub.s32 4294967266, %v579
    %v585 = vadd.s32 %v584, 127
    %v586 = vshll.u32 %v585, 23
    %v587 = vor.u32 4788187, %v586
    %v588 = vand.u32 2147483647, %v587
    %v590 = vcvt.s32.f32 %v583
    %v591 = vmul.f32 %v590, %v588
    %v592 = vxor.u32 %v591, 2147483648
    %v593 = vsel %vm510, %v592, %v591
    %v594 = vsub.s32 4, %v570
    %v595 = vsel %vm510, %v594, %v570
    %v596 = vsel %vm509, %v196, %v593
    %v597 = vsel %vm509, 0, %v595
    %v598 = vcosq.f32.pop %v596
    %v599 = vsinq.f32.pop %v596
    %vm600 = vweird.f32 %v196
    %v601 = vand.u32 %v597, 3
    %vm602 = vcmp.lt.s32.totalorder %v601, 2
    %vm603 = vcmp.eq.s32.totalorder %v601, 0
    %v604 = vxor.u32 %v599, 2147483648
    %v605 = vsel %vm603, %v598, %v604
    %vm606 = vcmp.eq.s32.totalorder %v601, 2
    %v607 = vxor.u32 %v598, 2147483648
    %v608 = vsel %vm606, %v607, %v599
    %v609 = vsel %vm602, %v605, %v608
    %v610 = vsel %vm600, nan, %v609
    %v611 = vrcp.pop %v507
    %v612 = vmul.f32 %v300, %v611
    %v613 = vrcp.pop %v610
    %v614 = vmul.f32 %v404, %v613
    %v615 = vmul.f32 %v59, %v612
    %v616 = vmul.f32 %v59, %v614
    %v617 = vadd.f32 %v25, %v615
    %v618 = vadd.f32 %v26, %v616
    %619 = vst [vmem:[#allocation6] sm:$0xff] %v617
    %620 = vst [vmem:[#allocation6 + $0x8] sm:$0xff] %v618
    // Predicated region
    $region14: #{tpu_custom_call.1} parent=1 // pred_check
      _
    $region15: #{tpu_custom_call.1} parent=1 // pred_check_branch
      %622 = sbr.rel (0) target = $region17
    $region16: #{tpu_custom_call.1} parent=1 // pred_region
      %s624 = ssub.s32 256, 256
      %625 = vsyncadd [#allocation5], %s624
      %s627 = sshll.u32 [#allocation6], 4
      %s628 = int_to_ptr.vmem [resolvable:$true] %s627
      %630 = dma.vmem_to_hbm [thread:$0]  %s628, 256, %s2, [#allocation5]
    $region17: #{tpu_custom_call.1} parent=1 // pred_fallthru
      _
    // Predicated region
    $region18: #{tpu_custom_call.1} parent=1 // pred_check
      _
    $region19: #{tpu_custom_call.1} parent=1 // pred_check_branch
      %632 = sbr.rel (0) target = $region21
    $region20: #{tpu_custom_call.1} parent=1 // pred_region
      %633 = dma.done [#allocation5], 256
    $region21: #{tpu_custom_call.1} parent=1 // pred_fallthru
      _
    %634 = vsyncpa [#allocation4], 1
    %635 = vsyncpa [#allocation5], 1

// kernel: tpu_custom_call.1
$region0: #{tpu_custom_call.1}
  #allocation0 [shape = 'u32[]', space=smem, size = 0x4, offset = 0x4, fixed_abs, tag = 'smem constant byte address 0x4 - core index']
  #allocation1 [shape = 'u32[144,128]{1,0:T(1,128)}', space=vmem, size = 0x12000, scoped, tag = 'internal scratch']
  %s0 = inlined_call_operand.hbm [shape: f32[8,256], index: 0, kind: input, shape index: {}]
  %s1 = inlined_call_operand.vmem [shape: f32[8,1], index: 1, kind: output, shape index: {}]
  %s2 = sld [smem:[#allocation0]]
  $region18: #{tpu_custom_call.1} parent=0
    _
  %s4 = ssub.s32 1, %s2
  %s5 = scalar_select 0, %s4, %s2
  $region1: #{tpu_custom_call.1} parent=0
    #allocation2 [shape = 'u8[8192]{0}', space=vmem, size = 0x2000, scoped, tag = 'input window, operand 0, single buffered']
    #allocation3 [shape = 's32[1]{0}', space=sflag, size = 0x4, scoped, tag = 'scoped memory for tpu_custom_call.1']
    %6 = vsyncpa [#allocation3], 0
    // Predicated region
    $region2: #{tpu_custom_call.1} parent=1 // pred_check
      _
    $region3: #{tpu_custom_call.1} parent=1 // pred_check_branch
      %8 = sbr.rel (0) target = $region5
    $region4: #{tpu_custom_call.1} parent=1 // pred_region
      %s10 = ssub.s32 256, 256
      %11 = vsyncadd [#allocation3], %s10
      %s13 = sshll.u32 [#allocation2], 4
      %s14 = int_to_ptr.vmem [resolvable:$true] %s13
      %16 = dma.hbm_to_vmem [thread:$0]  %s0, 256, %s14, [#allocation3]
    $region5: #{tpu_custom_call.1} parent=1 // pred_fallthru
      _
    // Predicated region
    $region6: #{tpu_custom_call.1} parent=1 // pred_check
      _
    $region7: #{tpu_custom_call.1} parent=1 // pred_check_branch
      %18 = sbr.rel (0) target = $region9
    $region8: #{tpu_custom_call.1} parent=1 // pred_region
      %19 = dma.done [#allocation3], 256
    $region9: #{tpu_custom_call.1} parent=1 // pred_fallthru
      _
    %v20 = vld [vmem:[#allocation2] sm:$0xff]
    %v21 = vld [vmem:[#allocation2 + $0x8] sm:$0xff]
    %v22 = vadd.f32 %v20, %v21
    %23 = vadd.xlane.f32.xlu0 %v22
    %v24 = vpop.xlane.xlu0 %23
    %v25 = vmul.f32 %v24, 0.00390625
    %v26 = vsub.f32 %v20, %v25
    %v27 = vsub.f32 %v21, %v25
    %v28 = vmul.f32 %v26, %v26
    %v29 = vmul.f32 %v27, %v27
    %v30 = vadd.f32 %v28, %v29
    %31 = vadd.xlane.f32.xlu0 %v30
    %v32 = vpop.xlane.xlu0 %31
    %v33 = vmul.f32 %v32, 0.003921569
    %v34 = vrsqrt.pop %v33
    %v35 = vmul.f32 %v33, %v34
    %vm36 = vcmp.eq.f32.partialorder %v33, inf
    %v37 = vsel %vm36, %v33, %v35
    %vm38 = vcmp.eq.f32.partialorder %v33, 0.0
    %v39 = vand.u32 %v33, 2147483648
    %v40 = vsel %vm38, %v39, %v37
    %v41 = vmul.f32 %v40, 0.31622776
    %vm42 = vcmask 7168
    %43 = vst.msk [vmem:[%s1] sm:$0xff] %vm42, %v41
    // Predicated region
    $region10: #{tpu_custom_call.1} parent=1 // pred_check
      _
    $region11: #{tpu_custom_call.1} parent=1 // pred_check_branch
      %45 = sbr.rel (0) target = $region13
    $region12: #{tpu_custom_call.1} parent=1 // pred_region
      _
    $region13: #{tpu_custom_call.1} parent=1 // pred_fallthru
      _
    // Predicated region
    $region14: #{tpu_custom_call.1} parent=1 // pred_check
      _
    $region15: #{tpu_custom_call.1} parent=1 // pred_check_branch
      %47 = sbr.rel (0) target = $region17
    $region16: #{tpu_custom_call.1} parent=1 // pred_region
      _
    $region17: #{tpu_custom_call.1} parent=1 // pred_fallthru
      _
    %48 = vsyncpa [#allocation3], 1

</llo_original>
